<compile_context>
chip_gen: v5e
topology: v5e:2x2
jax: 0.10.0
libtpu: 0.0.40
codegen_flags: <defaults>
</compile_context>

<pallas_src>
import jax
import jax.numpy as jnp
from jax.experimental import pallas as pl
from jax.experimental.pallas import tpu as pltpu

IN_DIM = 28 * 28   # 784
HID_DIM = 16
OUT_DIM = 10

HID_PAD = 128      # lane-dense hidden width (zero-padded, numerically exact)
OUT_PAD = 16       # small output width; block uses full last dim (legal), masked vst is hidden by HBM


def _round_up(v, m):
    return -(-v // m) * m


def mlp_kernel(x_ref, w1_ref, b1_ref, w2_ref, b2_ref, o_ref):
    # In-kernel f32 -> bf16 cast of the streamed x tile (VPU op, hidden under DMA).
    x = x_ref[...].astype(jnp.bfloat16)
    # fc1: (TB, 784)bf16 @ (784, 128)bf16 -> f32 accumulate on the MXU.
    h = jnp.dot(x, w1_ref[...], preferred_element_type=jnp.float32)
    # Bias + ReLU in f32 on lane-dense 128-wide vregs.
    h = jnp.maximum(h + b1_ref[...], 0.0)
    # fc2 in bf16 on the MXU (f32 accumulate); w2 stays VMEM-resident.
    y = jnp.dot(h.astype(jnp.bfloat16), w2_ref[...],
                preferred_element_type=jnp.float32)
    o_ref[...] = (y + b2_ref[...]).astype(o_ref.dtype)


def prepare_params(w1, b1, w2, b2):
    """Pad/cast params once (hoisted out of the per-call forward path).

    w1: (784, 16), b1: (16,), w2: (16, 10), b2: (10,).
    Zero padding preserves results exactly (padded hidden lanes stay 0 after ReLU).
    """
    w1p = jnp.zeros((IN_DIM, HID_PAD), jnp.bfloat16).at[:, :HID_DIM].set(
        w1.astype(jnp.bfloat16))
    b1p = jnp.zeros((1, HID_PAD), jnp.float32).at[:, :HID_DIM].set(
        b1.reshape(1, HID_DIM).astype(jnp.float32))
    w2p = jnp.zeros((HID_PAD, OUT_PAD), jnp.bfloat16).at[:HID_DIM, :OUT_DIM].set(
        w2.astype(jnp.bfloat16))
    b2p = jnp.zeros((1, OUT_PAD), jnp.float32).at[:, :OUT_DIM].set(
        b2.reshape(1, OUT_DIM).astype(jnp.float32))
    return w1p, b1p, w2p, b2p


def simple_mlp_forward(x, params, *, tb=1024):
    """x: (B, 784) f32; params: output of prepare_params(). Returns (B, 10) f32."""
    w1p, b1p, w2p, b2p = params
    B = x.shape[0]

    # Batch tile: multiple of 16 sublane-rows, capped at `tb`.
    TB = min(_round_up(tb, 16), _round_up(B, 16))
    Bp = _round_up(B, TB)

    # Only pad when the batch is ragged w.r.t. the tile (no full-batch copy otherwise).
    if Bp != B:
        x = jnp.pad(x, ((0, Bp - B), (0, 0)))

    grid = (Bp // TB,)

    cost = pl.CostEstimate(
        flops=2 * Bp * IN_DIM * HID_PAD + 2 * Bp * HID_PAD * OUT_PAD,
        transcendentals=0,
        bytes_accessed=(Bp * IN_DIM * 4            # x (f32 in, read once)
                        + IN_DIM * HID_PAD * 2     # w1 (bf16)
                        + HID_PAD * OUT_PAD * 2    # w2 (bf16)
                        + (HID_PAD + OUT_PAD) * 4  # biases (f32)
                        + Bp * OUT_PAD * 4))       # output (f32, 16 lanes)

    out = pl.pallas_call(
        mlp_kernel,
        out_shape=jax.ShapeDtypeStruct((Bp, OUT_PAD), jnp.float32),
        grid=grid,
        in_specs=[
            pl.BlockSpec((TB, IN_DIM), lambda i: (i, 0)),        # x: streamed per tile
            pl.BlockSpec((IN_DIM, HID_PAD), lambda i: (0, 0)),   # w1: resident
            pl.BlockSpec((1, HID_PAD), lambda i: (0, 0)),        # b1: resident
            pl.BlockSpec((HID_PAD, OUT_PAD), lambda i: (0, 0)),  # w2: resident
            pl.BlockSpec((1, OUT_PAD), lambda i: (0, 0)),        # b2: resident
        ],
        out_specs=pl.BlockSpec((TB, OUT_PAD), lambda i: (i, 0)),
        compiler_params=pltpu.CompilerParams(
            dimension_semantics=("parallel",)),
        cost_estimate=cost,
    )(x, w1p, b1p, w2p, b2p)

    # Slice back to the real batch and the real 10 output classes.
    return out[:B, :OUT_DIM]


def init_params(key):
    """Deterministic init mimicking PyTorch Linear's U(-1/sqrt(fan_in), 1/sqrt(fan_in))."""
    k1, k2, k3, k4 = jax.random.split(key, 4)
    bound1 = 1.0 / jnp.sqrt(jnp.float32(IN_DIM))
    bound2 = 1.0 / jnp.sqrt(jnp.float32(HID_DIM))
    # Stored already transposed relative to torch: (in_features, out_features).
    w1 = jax.random.uniform(k1, (IN_DIM, HID_DIM), jnp.float32, -bound1, bound1)
    b1 = jax.random.uniform(k2, (HID_DIM,), jnp.float32, -bound1, bound1)
    w2 = jax.random.uniform(k3, (HID_DIM, OUT_DIM), jnp.float32, -bound2, bound2)
    b2 = jax.random.uniform(k4, (OUT_DIM,), jnp.float32, -bound2, bound2)
    return w1, b1, w2, b2


if __name__ == "__main__":
    key = jax.random.PRNGKey(0)
    k_params, k_x = jax.random.split(key)

    w1, b1, w2, b2 = init_params(k_params)
    params = prepare_params(w1, b1, w2, b2)   # padded/casted once, reused per call

    # Small correctness-test batch; the tiling / bf16 / lane-padding wins pay off
    # at large batch (B >= ~1k), where the kernel streams x at HBM bandwidth.
    B = 8
    x = jax.random.normal(k_x, (B, IN_DIM), jnp.float32)

    out = simple_mlp_forward(x, params)
    out = jax.block_until_ready(out)

    # Pure-JAX reference of the same math: fc1 and fc2 inputs bf16-rounded
    # (matching the kernel's bf16 MXU path with f32 accumulation).
    xr = x.astype(jnp.bfloat16).astype(jnp.float32)
    w1r = w1.astype(jnp.bfloat16).astype(jnp.float32)
    h = jnp.maximum(xr @ w1r + b1, 0.0)
    hr = h.astype(jnp.bfloat16).astype(jnp.float32)
    w2r = w2.astype(jnp.bfloat16).astype(jnp.float32)
    ref = hr @ w2r + b2

    assert out.shape == (B, OUT_DIM)
    assert jnp.allclose(out, ref, atol=2e-3, rtol=2e-3)

    print("KERNEL_OK")
</pallas_src>

<mosaic_0001>
module attributes {stable_mosaic.version = 11 : i64} {
  func.func @mlp_kernel(%arg0: i32, %arg1: memref<16x784xf32, #tpu.memory_space<vmem>>, %arg2: memref<784x128xbf16, #tpu.memory_space<vmem>>, %arg3: memref<1x128xf32, #tpu.memory_space<vmem>>, %arg4: memref<128x16xbf16, #tpu.memory_space<vmem>>, %arg5: memref<1x16xf32, #tpu.memory_space<vmem>>, %arg6: memref<16x16xf32, #tpu.memory_space<vmem>>) attributes {dimension_semantics = [#tpu.dimension_semantics<parallel>], iteration_bounds = array<i64: 1>, scalar_prefetch = 0 : i64, scratch_operands = 0 : i64, tpu.core_type = #tpu.core_type<tc>, window_params = [{transform_indices = @transform_0, window_bounds = array<i64: 16, 784>}, {pipeline_mode = #tpu.pipeline_mode<synchronous>, transform_indices = @transform_1, window_bounds = array<i64: 784, 128>}, {pipeline_mode = #tpu.pipeline_mode<synchronous>, transform_indices = @transform_2, window_bounds = array<i64: 1, 128>}, {pipeline_mode = #tpu.pipeline_mode<synchronous>, transform_indices = @transform_3, window_bounds = array<i64: 128, 16>}, {pipeline_mode = #tpu.pipeline_mode<synchronous>, transform_indices = @transform_4, window_bounds = array<i64: 1, 16>}, {transform_indices = @transform_5, window_bounds = array<i64: 16, 16>}]} {
    %c0 = arith.constant 0 : index
    %c0_0 = arith.constant 0 : index
    %0 = vector.load %arg1[%c0, %c0_0] : memref<16x784xf32, #tpu.memory_space<vmem>>, vector<16x784xf32>
    %1 = arith.truncf %0 : vector<16x784xf32> to vector<16x784xbf16>
    %c0_1 = arith.constant 0 : index
    %c0_2 = arith.constant 0 : index
    %2 = vector.load %arg2[%c0_1, %c0_2] : memref<784x128xbf16, #tpu.memory_space<vmem>>, vector<784x128xbf16>
    %cst = arith.constant dense<0.000000e+00> : vector<16x128xf32>
    %3 = tpu.matmul %1, %2, %cst {dimension_numbers = #tpu.dot_dimension_numbers<[1], [0], [0], [1], [0, 0, 1, 1], [], []>} : vector<16x784xbf16>, vector<784x128xbf16>, vector<16x128xf32> -> vector<16x128xf32>
    %c0_3 = arith.constant 0 : index
    %c0_4 = arith.constant 0 : index
    %4 = vector.load %arg3[%c0_3, %c0_4] : memref<1x128xf32, #tpu.memory_space<vmem>>, vector<1x128xf32>
    %5 = vector.broadcast %4 : vector<1x128xf32> to vector<16x128xf32>
    %6 = arith.addf %3, %5 : vector<16x128xf32>
    %cst_5 = arith.constant 0.000000e+00 : f32
    %7 = vector.broadcast %cst_5 : f32 to vector<16x128xf32>
    %8 = arith.maximumf %6, %7 : vector<16x128xf32>
    %9 = arith.truncf %8 : vector<16x128xf32> to vector<16x128xbf16>
    %c0_6 = arith.constant 0 : index
    %c0_7 = arith.constant 0 : index
    %10 = vector.load %arg4[%c0_6, %c0_7] : memref<128x16xbf16, #tpu.memory_space<vmem>>, vector<128x16xbf16>
    %cst_8 = arith.constant dense<0.000000e+00> : vector<16x16xf32>
    %11 = tpu.matmul %9, %10, %cst_8 {dimension_numbers = #tpu.dot_dimension_numbers<[1], [0], [0], [1], [0, 0, 1, 1], [], []>} : vector<16x128xbf16>, vector<128x16xbf16>, vector<16x16xf32> -> vector<16x16xf32>
    %c0_9 = arith.constant 0 : index
    %c0_10 = arith.constant 0 : index
    %12 = vector.load %arg5[%c0_9, %c0_10] : memref<1x16xf32, #tpu.memory_space<vmem>>, vector<1x16xf32>
    %13 = vector.broadcast %12 : vector<1x16xf32> to vector<16x16xf32>
    %14 = arith.addf %11, %13 : vector<16x16xf32>
    %c0_11 = arith.constant 0 : index
    %c0_12 = arith.constant 0 : index
    %15 = vector.load %arg6[%c0_11, %c0_12] : memref<16x16xf32, #tpu.memory_space<vmem>>, vector<16x16xf32>
    tpu.vector_store %arg6[%c0_11, %c0_12], %14 {strides = array<i32>} : memref<16x16xf32, #tpu.memory_space<vmem>>, vector<16x16xf32>,
    return
  }
  func.func @transform_0(%arg0: i32) -> (i32, i32) {
    %c0_i32 = arith.constant 0 : i32
    %c0_i32_0 = arith.constant 0 : i32
    return %arg0, %c0_i32 : i32, i32
  }
  func.func @transform_1(%arg0: i32) -> (i32, i32) {
    %c0_i32 = arith.constant 0 : i32
    %c0_i32_0 = arith.constant 0 : i32
    %c0_i32_1 = arith.constant 0 : i32
    return %c0_i32, %c0_i32_0 : i32, i32
  }
  func.func @transform_2(%arg0: i32) -> (i32, i32) {
    %c0_i32 = arith.constant 0 : i32
    %c0_i32_0 = arith.constant 0 : i32
    %c0_i32_1 = arith.constant 0 : i32
    return %c0_i32, %c0_i32_0 : i32, i32
  }
  func.func @transform_3(%arg0: i32) -> (i32, i32) {
    %c0_i32 = arith.constant 0 : i32
    %c0_i32_0 = arith.constant 0 : i32
    %c0_i32_1 = arith.constant 0 : i32
    return %c0_i32, %c0_i32_0 : i32, i32
  }
  func.func @transform_4(%arg0: i32) -> (i32, i32) {
    %c0_i32 = arith.constant 0 : i32
    %c0_i32_0 = arith.constant 0 : i32
    %c0_i32_1 = arith.constant 0 : i32
    return %c0_i32, %c0_i32_0 : i32, i32
  }
  func.func @transform_5(%arg0: i32) -> (i32, i32) {
    %c0_i32 = arith.constant 0 : i32
    %c0_i32_0 = arith.constant 0 : i32
    return %arg0, %c0_i32 : i32, i32
  }
}

</mosaic_0001>

<llo_original>
// kernel: tpu_custom_call.1
$region0: #{tpu_custom_call.1}
  #allocation0 [shape = 'u32[]', space=smem, size = 0x4, offset = 0x4, fixed_abs, tag = 'smem constant byte address 0x4 - core index']
  #allocation1 [shape = 'u32[72,128]{1,0:T(1,128)}', space=vmem, size = 0x9000, scoped, tag = 'internal scratch']
  %s0 = inlined_call_operand.hbm [shape: f32[16,784], index: 0, kind: input, shape index: {}]
  %s1 = inlined_call_operand.hbm [shape: bf16[784,128], index: 1, kind: input, shape index: {}]
  %s2 = inlined_call_operand.vmem [shape: f32[1,128], index: 2, kind: input, shape index: {}]
  %s3 = inlined_call_operand.vmem [shape: bf16[128,16], index: 3, kind: input, shape index: {}]
  %s4 = inlined_call_operand.vmem [shape: f32[1,16], index: 4, kind: input, shape index: {}]
  %s5 = inlined_call_operand.hbm [shape: f32[16,16], index: 5, kind: output, shape index: {}]
  %s6 = sld [smem:[#allocation0]]
  $region38: #{tpu_custom_call.1} parent=0
    _
  %s8 = ssub.s32 1, %s6
  %s9 = scalar_select 0, %s8, %s6
  $region1: #{tpu_custom_call.1} parent=0
    #allocation2 [shape = 'u8[57344]{0}', space=vmem, size = 0xe000, scoped, tag = 'input window, operand 0, single buffered']
    #allocation3 [shape = 's32[1]{0}', space=sflag, size = 0x4, scoped, tag = 'scoped memory for tpu_custom_call.1']
    #allocation4 [shape = 's32[1]{0}', space=sflag, size = 0x4, scoped, tag = 'scoped memory for tpu_custom_call.1']
    #allocation5 [shape = 'u8[200704]{0}', space=vmem, size = 0x31000, scoped, tag = 'input window, operand 1, single buffered']
    #allocation6 [shape = 's32[1]{0}', space=sflag, size = 0x4, scoped, tag = 'scoped memory for tpu_custom_call.1']
    #allocation7 [shape = 'u8[8192]{0}', space=vmem, size = 0x2000, scoped, tag = 'output window, operand 0, single buffered']
    %10 = vsyncpa [#allocation3], 0
    %11 = vsyncpa [#allocation6], 0
    %12 = vsyncpa [#allocation4], 0
    // Predicated region
    $region2: #{tpu_custom_call.1} parent=1 // pred_check
      _
    $region3: #{tpu_custom_call.1} parent=1 // pred_check_branch
      %14 = sbr.rel (0) target = $region5
    $region4: #{tpu_custom_call.1} parent=1 // pred_region
      %16 = vsyncadd [#allocation3], 0
      %s17 = sshll.u32 %s0, 4
      %s18 = int_to_ptr.hbm [resolvable:$true] %s17
      %s19 = sshll.u32 [#allocation2], 4
      %s20 = int_to_ptr.vmem [resolvable:$true] %s19
      %25 = dma.hbm_to_vmem [thread:$0]  %s18, 1792, %s20, [#allocation3], 896, 896, 56
    $region5: #{tpu_custom_call.1} parent=1 // pred_fallthru
      _
    // Predicated region
    $region6: #{tpu_custom_call.1} parent=1 // pred_check
      _
    $region7: #{tpu_custom_call.1} parent=1 // pred_check_branch
      %27 = sbr.rel (0) target = $region9
    $region8: #{tpu_custom_call.1} parent=1 // pred_region
      %29 = vsyncadd [#allocation6], 0
      %s30 = sshll.u32 %s1, 4
      %s31 = int_to_ptr.hbm [resolvable:$true] %s30
      %s32 = sshll.u32 [#allocation5], 4
      %s33 = int_to_ptr.vmem [resolvable:$true] %s32
      %38 = dma.hbm_to_vmem [thread:$0]  %s31, 6272, %s33, [#allocation6], 64, 64, 4
    $region9: #{tpu_custom_call.1} parent=1 // pred_fallthru
      _
    // Predicated region
    $region10: #{tpu_custom_call.1} parent=1 // pred_check
      _
    $region11: #{tpu_custom_call.1} parent=1 // pred_check_branch
      %40 = sbr.rel (0) target = $region13
    $region12: #{tpu_custom_call.1} parent=1 // pred_region
      _
    $region13: #{tpu_custom_call.1} parent=1 // pred_fallthru
      _
    // Predicated region
    $region14: #{tpu_custom_call.1} parent=1 // pred_check
      _
    $region15: #{tpu_custom_call.1} parent=1 // pred_check_branch
      %42 = sbr.rel (0) target = $region17
    $region16: #{tpu_custom_call.1} parent=1 // pred_region
      _
    $region17: #{tpu_custom_call.1} parent=1 // pred_fallthru
      _
    // Predicated region
    $region18: #{tpu_custom_call.1} parent=1 // pred_check
      _
    $region19: #{tpu_custom_call.1} parent=1 // pred_check_branch
      %44 = sbr.rel (0) target = $region21
    $region20: #{tpu_custom_call.1} parent=1 // pred_region
      _
    $region21: #{tpu_custom_call.1} parent=1 // pred_fallthru
      _
    // Predicated region
    $region22: #{tpu_custom_call.1} parent=1 // pred_check
      _
    $region23: #{tpu_custom_call.1} parent=1 // pred_check_branch
      %46 = sbr.rel (0) target = $region25
    $region24: #{tpu_custom_call.1} parent=1 // pred_region
      %48 = dma.done [#allocation3], 1792
    $region25: #{tpu_custom_call.1} parent=1 // pred_fallthru
      _
    // Predicated region
    $region26: #{tpu_custom_call.1} parent=1 // pred_check
      _
    $region27: #{tpu_custom_call.1} parent=1 // pred_check_branch
      %50 = sbr.rel (0) target = $region29
    $region28: #{tpu_custom_call.1} parent=1 // pred_region
      %52 = dma.done [#allocation6], 6272
    $region29: #{tpu_custom_call.1} parent=1 // pred_fallthru
      _
    %v54 = vld [vmem:[#allocation2] sm:$0xff]
    %v55 = vld [vmem:[#allocation2 + $0x8] sm:$0xff]
    %v56 = vld [vmem:[#allocation2 + $0x10] sm:$0xff]
    %v57 = vld [vmem:[#allocation2 + $0x18] sm:$0xff]
    %v58 = vld [vmem:[#allocation2 + $0x20] sm:$0xff]
    %v59 = vld [vmem:[#allocation2 + $0x28] sm:$0xff]
    %v60 = vld [vmem:[#allocation2 + $0x30] sm:$0xff]
    %v61 = vld [vmem:[#allocation2 + $0x38] sm:$0xff]
    %v62 = vld [vmem:[#allocation2 + $0x40] sm:$0xff]
    %v63 = vld [vmem:[#allocation2 + $0x48] sm:$0xff]
    %v64 = vld [vmem:[#allocation2 + $0x50] sm:$0xff]
    %v65 = vld [vmem:[#allocation2 + $0x58] sm:$0xff]
    %v66 = vld [vmem:[#allocation2 + $0x60] sm:$0xff]
    %v67 = vld [vmem:[#allocation2 + $0x68] sm:$0xff]
    %v68 = vpack.c.bf16 %v61, %v54
    %v69 = vpack.c.bf16 %v62, %v55
    %v70 = vpack.c.bf16 %v63, %v56
    %v71 = vpack.c.bf16 %v64, %v57
    %v72 = vpack.c.bf16 %v65, %v58
    %v73 = vpack.c.bf16 %v66, %v59
    %v74 = vpack.c.bf16 %v67, %v60
    %v75 = vld [vmem:[#allocation5] sm:$0xf]
    %v76 = vld [vmem:[#allocation5 + $0x4] sm:$0xf]
    %v77 = vld [vmem:[#allocation5 + $0x8] sm:$0xf]
    %v78 = vld [vmem:[#allocation5 + $0xc] sm:$0xf]
    %v79 = vld [vmem:[#allocation5 + $0x10] sm:$0xf]
    %v80 = vld [vmem:[#allocation5 + $0x14] sm:$0xf]
    %v81 = vld [vmem:[#allocation5 + $0x18] sm:$0xf]
    %v82 = vld [vmem:[#allocation5 + $0x1c] sm:$0xf]
    %v83 = vld [vmem:[#allocation5 + $0x20] sm:$0xf]
    %v84 = vld [vmem:[#allocation5 + $0x24] sm:$0xf]
    %v85 = vld [vmem:[#allocation5 + $0x28] sm:$0xf]
    %v86 = vld [vmem:[#allocation5 + $0x2c] sm:$0xf]
    %v87 = vld [vmem:[#allocation5 + $0x30] sm:$0xf]
    %v88 = vld [vmem:[#allocation5 + $0x34] sm:$0xf]
    %v89 = vld [vmem:[#allocation5 + $0x38] sm:$0xf]
    %v90 = vld [vmem:[#allocation5 + $0x3c] sm:$0xf]
    %v91 = vld [vmem:[#allocation5 + $0x40] sm:$0xf]
    %v92 = vld [vmem:[#allocation5 + $0x44] sm:$0xf]
    %v93 = vld [vmem:[#allocation5 + $0x48] sm:$0xf]
    %v94 = vld [vmem:[#allocation5 + $0x4c] sm:$0xf]
    %v95 = vld [vmem:[#allocation5 + $0x50] sm:$0xf]
    %v96 = vld [vmem:[#allocation5 + $0x54] sm:$0xf]
    %v97 = vld [vmem:[#allocation5 + $0x58] sm:$0xf]
    %v98 = vld [vmem:[#allocation5 + $0x5c] sm:$0xf]
    %v99 = vld [vmem:[#allocation5 + $0x60] sm:$0xf]
    %v100 = vld [vmem:[#allocation5 + $0x64] sm:$0xf]
    %v101 = vld [vmem:[#allocation5 + $0x68] sm:$0xf]
    %v102 = vld [vmem:[#allocation5 + $0x6c] sm:$0xf]
    %v103 = vld [vmem:[#allocation5 + $0x70] sm:$0xf]
    %v104 = vld [vmem:[#allocation5 + $0x74] sm:$0xf]
    %v105 = vld [vmem:[#allocation5 + $0x78] sm:$0xf]
    %v106 = vld [vmem:[#allocation5 + $0x7c] sm:$0xf]
    %v107 = vld [vmem:[#allocation5 + $0x80] sm:$0xf]
    %v108 = vld [vmem:[#allocation5 + $0x84] sm:$0xf]
    %v109 = vld [vmem:[#allocation5 + $0x88] sm:$0xf]
    %v110 = vld [vmem:[#allocation5 + $0x8c] sm:$0xf]
    %v111 = vld [vmem:[#allocation5 + $0x90] sm:$0xf]
    %v112 = vld [vmem:[#allocation5 + $0x94] sm:$0xf]
    %v113 = vld [vmem:[#allocation5 + $0x98] sm:$0xf]
    %v114 = vld [vmem:[#allocation5 + $0x9c] sm:$0xf]
    %v115 = vld [vmem:[#allocation5 + $0xa0] sm:$0xf]
    %v116 = vld [vmem:[#allocation5 + $0xa4] sm:$0xf]
    %v117 = vld [vmem:[#allocation5 + $0xa8] sm:$0xf]
    %v118 = vld [vmem:[#allocation5 + $0xac] sm:$0xf]
    %v119 = vld [vmem:[#allocation5 + $0xb0] sm:$0xf]
    %v120 = vld [vmem:[#allocation5 + $0xb4] sm:$0xf]
    %v121 = vld [vmem:[#allocation5 + $0xb8] sm:$0xf]
    %v122 = vld [vmem:[#allocation5 + $0xbc] sm:$0xf]
    %v123 = vld [vmem:[#allocation5 + $0xc0] sm:$0xf]
    %v124 = vld [vmem:[#allocation5 + $0xc4] sm:$0xf]
    %v125 = vld [vmem:[#allocation5 + $0xc8] sm:$0xf]
    %v126 = vld [vmem:[#allocation5 + $0xcc] sm:$0xf]
    %v127 = vld [vmem:[#allocation5 + $0xd0] sm:$0xf]
    %v128 = vld [vmem:[#allocation5 + $0xd4] sm:$0xf]
    %v129 = vld [vmem:[#allocation5 + $0xd8] sm:$0xf]
    %v130 = vld [vmem:[#allocation5 + $0xdc] sm:$0xf]
    %v131 = vld [vmem:[#allocation5 + $0xe0] sm:$0xf]
    %v132 = vld [vmem:[#allocation5 + $0xe4] sm:$0xf]
    %v133 = vld [vmem:[#allocation5 + $0xe8] sm:$0xf]
    %v134 = vld [vmem:[#allocation5 + $0xec] sm:$0xf]
    %v135 = vld [vmem:[#allocation5 + $0xf0] sm:$0xf]
    %v136 = vld [vmem:[#allocation5 + $0xf4] sm:$0xf]
    %v137 = vld [vmem:[#allocation5 + $0xf8] sm:$0xf]
    %v138 = vld [vmem:[#allocation5 + $0xfc] sm:$0xf]
    %v139 = vld [vmem:[#allocation5 + $0x100] sm:$0xf]
    %v140 = vld [vmem:[#allocation5 + $0x104] sm:$0xf]
    %v141 = vld [vmem:[#allocation5 + $0x108] sm:$0xf]
    %v142 = vld [vmem:[#allocation5 + $0x10c] sm:$0xf]
    %v143 = vld [vmem:[#allocation5 + $0x110] sm:$0xf]
    %v144 = vld [vmem:[#allocation5 + $0x114] sm:$0xf]
    %v145 = vld [vmem:[#allocation5 + $0x118] sm:$0xf]
    %v146 = vld [vmem:[#allocation5 + $0x11c] sm:$0xf]
    %v147 = vld [vmem:[#allocation5 + $0x120] sm:$0xf]
    %v148 = vld [vmem:[#allocation5 + $0x124] sm:$0xf]
    %v149 = vld [vmem:[#allocation5 + $0x128] sm:$0xf]
    %v150 = vld [vmem:[#allocation5 + $0x12c] sm:$0xf]
    %v151 = vld [vmem:[#allocation5 + $0x130] sm:$0xf]
    %v152 = vld [vmem:[#allocation5 + $0x134] sm:$0xf]
    %v153 = vld [vmem:[#allocation5 + $0x138] sm:$0xf]
    %v154 = vld [vmem:[#allocation5 + $0x13c] sm:$0xf]
    %v155 = vld [vmem:[#allocation5 + $0x140] sm:$0xf]
    %v156 = vld [vmem:[#allocation5 + $0x144] sm:$0xf]
    %v157 = vld [vmem:[#allocation5 + $0x148] sm:$0xf]
    %v158 = vld [vmem:[#allocation5 + $0x14c] sm:$0xf]
    %v159 = vld [vmem:[#allocation5 + $0x150] sm:$0xf]
    %v160 = vld [vmem:[#allocation5 + $0x154] sm:$0xf]
    %v161 = vld [vmem:[#allocation5 + $0x158] sm:$0xf]
    %v162 = vld [vmem:[#allocation5 + $0x15c] sm:$0xf]
    %v163 = vld [vmem:[#allocation5 + $0x160] sm:$0xf]
    %v164 = vld [vmem:[#allocation5 + $0x164] sm:$0xf]
    %v165 = vld [vmem:[#allocation5 + $0x168] sm:$0xf]
    %v166 = vld [vmem:[#allocation5 + $0x16c] sm:$0xf]
    %v167 = vld [vmem:[#allocation5 + $0x170] sm:$0xf]
    %v168 = vld [vmem:[#allocation5 + $0x174] sm:$0xf]
    %v169 = vld [vmem:[#allocation5 + $0x178] sm:$0xf]
    %v170 = vld [vmem:[#allocation5 + $0x17c] sm:$0xf]
    %v171 = vld [vmem:[#allocation5 + $0x180] sm:$0xf]
    %v172 = vld [vmem:[#allocation5 + $0x184] sm:$0xf]
    %v173 = vld [vmem:[%s2] sm:$0x1]
    %v175 = vperm.slane %v173, 0
    %v275 = vunpack.c.l.b16 %v75
    %v276 = vunpack.c.l.b16 %v76
    %v277 = vunpack.c.l.b16 %v77
    %v278 = vunpack.c.l.b16 %v78
    %v279 = vunpack.c.l.b16 %v79
    %v280 = vunpack.c.l.b16 %v80
    %v281 = vunpack.c.l.b16 %v81
    %v282 = vunpack.c.l.b16 %v82
    %v283 = vunpack.c.l.b16 %v83
    %v284 = vunpack.c.l.b16 %v84
    %v285 = vunpack.c.l.b16 %v85
    %v286 = vunpack.c.l.b16 %v86
    %v287 = vunpack.c.l.b16 %v87
    %v288 = vunpack.c.l.b16 %v88
    %v289 = vunpack.c.l.b16 %v89
    %v290 = vunpack.c.l.b16 %v90
    %v291 = vunpack.c.l.b16 %v91
    %v292 = vunpack.c.l.b16 %v92
    %v293 = vunpack.c.l.b16 %v93
    %v294 = vunpack.c.l.b16 %v94
    %v295 = vunpack.c.l.b16 %v95
    %v296 = vunpack.c.l.b16 %v96
    %v297 = vunpack.c.l.b16 %v97
    %v298 = vunpack.c.l.b16 %v98
    %v299 = vunpack.c.l.b16 %v99
    %v300 = vunpack.c.l.b16 %v100
    %v301 = vunpack.c.l.b16 %v101
    %v302 = vunpack.c.l.b16 %v102
    %v303 = vunpack.c.l.b16 %v103
    %v304 = vunpack.c.l.b16 %v104
    %v305 = vunpack.c.l.b16 %v105
    %v306 = vunpack.c.l.b16 %v106
    %v307 = vunpack.c.l.b16 %v107
    %v308 = vunpack.c.l.b16 %v108
    %v309 = vunpack.c.l.b16 %v109
    %v310 = vunpack.c.l.b16 %v110
    %v311 = vunpack.c.l.b16 %v111
    %v312 = vunpack.c.l.b16 %v112
    %v313 = vunpack.c.l.b16 %v113
    %v314 = vunpack.c.l.b16 %v114
    %v315 = vunpack.c.l.b16 %v115
    %v316 = vunpack.c.l.b16 %v116
    %v317 = vunpack.c.l.b16 %v117
    %v318 = vunpack.c.l.b16 %v118
    %v319 = vunpack.c.l.b16 %v119
    %v320 = vunpack.c.l.b16 %v120
    %v321 = vunpack.c.l.b16 %v121
    %v322 = vunpack.c.l.b16 %v122
    %v323 = vunpack.c.l.b16 %v123
    %v324 = vunpack.c.l.b16 %v124
    %v325 = vunpack.c.l.b16 %v125
    %v326 = vunpack.c.l.b16 %v126
    %v327 = vunpack.c.l.b16 %v127
    %v328 = vunpack.c.l.b16 %v128
    %v329 = vunpack.c.l.b16 %v129
    %v330 = vunpack.c.l.b16 %v130
    %v331 = vunpack.c.l.b16 %v131
    %v332 = vunpack.c.l.b16 %v132
    %v333 = vunpack.c.l.b16 %v133
    %v334 = vunpack.c.l.b16 %v134
    %v335 = vunpack.c.l.b16 %v135
    %v336 = vunpack.c.l.b16 %v136
    %v337 = vunpack.c.l.b16 %v137
    %v338 = vunpack.c.l.b16 %v138
    %v339 = vunpack.c.l.b16 %v139
    %v340 = vunpack.c.l.b16 %v140
    %v341 = vunpack.c.l.b16 %v141
    %v342 = vunpack.c.l.b16 %v142
    %v343 = vunpack.c.l.b16 %v143
    %v344 = vunpack.c.l.b16 %v144
    %v345 = vunpack.c.l.b16 %v145
    %v346 = vunpack.c.l.b16 %v146
    %v347 = vunpack.c.l.b16 %v147
    %v348 = vunpack.c.l.b16 %v148
    %v349 = vunpack.c.l.b16 %v149
    %v350 = vunpack.c.l.b16 %v150
    %v351 = vunpack.c.l.b16 %v151
    %v352 = vunpack.c.l.b16 %v152
    %v353 = vunpack.c.l.b16 %v153
    %v354 = vunpack.c.l.b16 %v154
    %v355 = vunpack.c.l.b16 %v155
    %v356 = vunpack.c.l.b16 %v156
    %v357 = vunpack.c.l.b16 %v157
    %v358 = vunpack.c.l.b16 %v158
    %v359 = vunpack.c.l.b16 %v159
    %v360 = vunpack.c.l.b16 %v160
    %v361 = vunpack.c.l.b16 %v161
    %v362 = vunpack.c.l.b16 %v162
    %v363 = vunpack.c.l.b16 %v163
    %v364 = vunpack.c.l.b16 %v164
    %v365 = vunpack.c.l.b16 %v165
    %v366 = vunpack.c.l.b16 %v166
    %v367 = vunpack.c.l.b16 %v167
    %v368 = vunpack.c.l.b16 %v168
    %v369 = vunpack.c.l.b16 %v169
    %v370 = vunpack.c.l.b16 %v170
    %v371 = vunpack.c.l.b16 %v171
    %v372 = vunpack.c.l.b16 %v172
    %v373 = vpack.c.b16 %v276, %v275
    %v374 = vpack.c.b16 %v278, %v277
    %v375 = vpack.c.b16 %v280, %v279
    %v376 = vpack.c.b16 %v282, %v281
    %v377 = vpack.c.b16 %v284, %v283
    %v378 = vpack.c.b16 %v286, %v285
    %v379 = vpack.c.b16 %v288, %v287
    %v380 = vpack.c.b16 %v290, %v289
    %v381 = vpack.c.b16 %v292, %v291
    %v382 = vpack.c.b16 %v294, %v293
    %v383 = vpack.c.b16 %v296, %v295
    %v384 = vpack.c.b16 %v298, %v297
    %v385 = vpack.c.b16 %v300, %v299
    %v386 = vpack.c.b16 %v302, %v301
    %v387 = vpack.c.b16 %v304, %v303
    %v388 = vpack.c.b16 %v306, %v305
    %v389 = vpack.c.b16 %v308, %v307
    %v390 = vpack.c.b16 %v310, %v309
    %v391 = vpack.c.b16 %v312, %v311
    %v392 = vpack.c.b16 %v314, %v313
    %v393 = vpack.c.b16 %v316, %v315
    %v394 = vpack.c.b16 %v318, %v317
    %v395 = vpack.c.b16 %v320, %v319
    %v396 = vpack.c.b16 %v322, %v321
    %v397 = vpack.c.b16 %v324, %v323
    %v398 = vpack.c.b16 %v326, %v325
    %v399 = vpack.c.b16 %v328, %v327
    %v400 = vpack.c.b16 %v330, %v329
    %v401 = vpack.c.b16 %v332, %v331
    %v402 = vpack.c.b16 %v334, %v333
    %v403 = vpack.c.b16 %v336, %v335
    %v404 = vpack.c.b16 %v338, %v337
    %v405 = vpack.c.b16 %v340, %v339
    %v406 = vpack.c.b16 %v342, %v341
    %v407 = vpack.c.b16 %v344, %v343
    %v408 = vpack.c.b16 %v346, %v345
    %v409 = vpack.c.b16 %v348, %v347
    %v410 = vpack.c.b16 %v350, %v349
    %v411 = vpack.c.b16 %v352, %v351
    %v412 = vpack.c.b16 %v354, %v353
    %v413 = vpack.c.b16 %v356, %v355
    %v414 = vpack.c.b16 %v358, %v357
    %v415 = vpack.c.b16 %v360, %v359
    %v416 = vpack.c.b16 %v362, %v361
    %v417 = vpack.c.b16 %v364, %v363
    %v418 = vpack.c.b16 %v366, %v365
    %v419 = vpack.c.b16 %v368, %v367
    %v420 = vpack.c.b16 %v370, %v369
    %v421 = vpack.c.b16 %v372, %v371
    %vm471 = vcmask 130048
    %v473 = vsel %vm471, %v74, 0
    %475 = vmatpush.bf16.msra.mxu0 %v380
    %476 = vmatpush.bf16.msra.mxu0 %v379
    %477 = vmatpush.bf16.msra.mxu0 %v378
    %478 = vmatpush.bf16.msra.mxu0 %v377
    %479 = vmatpush.bf16.msra.mxu0 %v376
    %480 = vmatpush.bf16.msra.mxu0 %v375
    %481 = vmatpush.bf16.msra.mxu0 %v374
    %482 = vmatpush.bf16.msra.mxu0 %v373
    %483 = vmatmul.bf16.gmra.mxu0 %v68
    %v484 = vpop.f32.mrf.mxu0
    %v485 = vadd.f32 %v175, %v484
    %v486 = vpop.f32.mrf.mxu0
    %v487 = vadd.f32 %v175, %v486
    %488 = vdwg.mxu0
    %489 = vmatpush.bf16.msra.mxu0 %v388
    %490 = vmatpush.bf16.msra.mxu0 %v387
    %491 = vmatpush.bf16.msra.mxu0 %v386
    %492 = vmatpush.bf16.msra.mxu0 %v385
    %493 = vmatpush.bf16.msra.mxu0 %v384
    %494 = vmatpush.bf16.msra.mxu0 %v383
    %495 = vmatpush.bf16.msra.mxu0 %v382
    %496 = vmatpush.bf16.msra.mxu0 %v381
    %497 = vmatmul.bf16.gmra.mxu0 %v69
    %v498 = vpop.f32.mrf.mxu0
    %v499 = vadd.f32 %v485, %v498
    %v500 = vpop.f32.mrf.mxu0
    %v501 = vadd.f32 %v487, %v500
    %502 = vdwg.mxu0
    %503 = vmatpush.bf16.msra.mxu0 %v396
    %504 = vmatpush.bf16.msra.mxu0 %v395
    %505 = vmatpush.bf16.msra.mxu0 %v394
    %506 = vmatpush.bf16.msra.mxu0 %v393
    %507 = vmatpush.bf16.msra.mxu0 %v392
    %508 = vmatpush.bf16.msra.mxu0 %v391
    %509 = vmatpush.bf16.msra.mxu0 %v390
    %510 = vmatpush.bf16.msra.mxu0 %v389
    %511 = vmatmul.bf16.gmra.mxu0 %v70
    %v512 = vpop.f32.mrf.mxu0
    %v513 = vadd.f32 %v499, %v512
    %v514 = vpop.f32.mrf.mxu0
    %v515 = vadd.f32 %v501, %v514
    %516 = vdwg.mxu0
    %517 = vmatpush.bf16.msra.mxu0 %v404
    %518 = vmatpush.bf16.msra.mxu0 %v403
    %519 = vmatpush.bf16.msra.mxu0 %v402
    %520 = vmatpush.bf16.msra.mxu0 %v401
    %521 = vmatpush.bf16.msra.mxu0 %v400
    %522 = vmatpush.bf16.msra.mxu0 %v399
    %523 = vmatpush.bf16.msra.mxu0 %v398
    %524 = vmatpush.bf16.msra.mxu0 %v397
    %525 = vmatmul.bf16.gmra.mxu0 %v71
    %v526 = vpop.f32.mrf.mxu0
    %v527 = vadd.f32 %v513, %v526
    %v528 = vpop.f32.mrf.mxu0
    %v529 = vadd.f32 %v515, %v528
    %530 = vdwg.mxu0
    %531 = vmatpush.bf16.msra.mxu0 %v412
    %532 = vmatpush.bf16.msra.mxu0 %v411
    %533 = vmatpush.bf16.msra.mxu0 %v410
    %534 = vmatpush.bf16.msra.mxu0 %v409
    %535 = vmatpush.bf16.msra.mxu0 %v408
    %536 = vmatpush.bf16.msra.mxu0 %v407
    %537 = vmatpush.bf16.msra.mxu0 %v406
    %538 = vmatpush.bf16.msra.mxu0 %v405
    %539 = vmatmul.bf16.gmra.mxu0 %v72
    %v540 = vpop.f32.mrf.mxu0
    %v541 = vadd.f32 %v527, %v540
    %v542 = vpop.f32.mrf.mxu0
    %v543 = vadd.f32 %v529, %v542
    %544 = vdwg.mxu0
    %545 = vmatpush.bf16.msra.mxu0 %v420
    %546 = vmatpush.bf16.msra.mxu0 %v419
    %547 = vmatpush.bf16.msra.mxu0 %v418
    %548 = vmatpush.bf16.msra.mxu0 %v417
    %549 = vmatpush.bf16.msra.mxu0 %v416
    %550 = vmatpush.bf16.msra.mxu0 %v415
    %551 = vmatpush.bf16.msra.mxu0 %v414
    %552 = vmatpush.bf16.msra.mxu0 %v413
    %553 = vmatmul.bf16.gmra.mxu0 %v73
    %v554 = vpop.f32.mrf.mxu0
    %v555 = vadd.f32 %v541, %v554
    %v556 = vpop.f32.mrf.mxu0
    %v557 = vadd.f32 %v543, %v556
    %558 = vdwg.mxu0
    %559 = vmatpush.bf16.msra.mxu0 0
    %560 = vmatpush.bf16.msra.mxu0 0
    %561 = vmatpush.bf16.msra.mxu0 0
    %562 = vmatpush.bf16.msra.mxu0 0
    %563 = vmatpush.bf16.msra.mxu0 0
    %564 = vmatpush.bf16.msra.mxu0 0
    %565 = vmatpush.bf16.msra.mxu0 0
    %566 = vmatpush.bf16.msra.mxu0 %v421
    %567 = vmatmul.bf16.gmra.mxu0 %v473
    %v568 = vpop.f32.mrf.mxu0
    %v569 = vadd.f32 %v555, %v568
    %v570 = vpop.f32.mrf.mxu0
    %v571 = vadd.f32 %v557, %v570
    %572 = vdwg.mxu0
    %v573 = vmax.f32 %v569, 0.0
    %v574 = vmax.f32 %v571, 0.0
    %v575 = vpack.c.bf16 %v574, %v573
    %v576 = vld [vmem:[%s3] sm:$0xf]
    %v577 = vld [vmem:[%s3 + $0x4] sm:$0xf]
    %v578 = vld [vmem:[%s3 + $0x8] sm:$0xf]
    %v579 = vld [vmem:[%s3 + $0xc] sm:$0xf]
    %v580 = vld [vmem:[%s3 + $0x10] sm:$0xf]
    %v581 = vld [vmem:[%s3 + $0x14] sm:$0xf]
    %v582 = vld [vmem:[%s3 + $0x18] sm:$0xf]
    %v583 = vld [vmem:[%s3 + $0x1c] sm:$0xf]
    %v584 = vld [vmem:[%s3 + $0x20] sm:$0xf]
    %v585 = vld [vmem:[%s3 + $0x24] sm:$0xf]
    %v586 = vld [vmem:[%s3 + $0x28] sm:$0xf]
    %v587 = vld [vmem:[%s3 + $0x2c] sm:$0xf]
    %v588 = vld [vmem:[%s3 + $0x30] sm:$0xf]
    %v589 = vld [vmem:[%s3 + $0x34] sm:$0xf]
    %v590 = vld [vmem:[%s3 + $0x38] sm:$0xf]
    %v591 = vld [vmem:[%s3 + $0x3c] sm:$0xf]
    %v592 = vld [vmem:[%s4] sm:$0x1]
    %v594 = vperm.slane %v592, 0
    %v612 = vunpack.c.l.b16 %v576
    %v613 = vunpack.c.l.b16 %v577
    %v614 = vunpack.c.l.b16 %v578
    %v615 = vunpack.c.l.b16 %v579
    %v616 = vunpack.c.l.b16 %v580
    %v617 = vunpack.c.l.b16 %v581
    %v618 = vunpack.c.l.b16 %v582
    %v619 = vunpack.c.l.b16 %v583
    %v620 = vunpack.c.l.b16 %v584
    %v621 = vunpack.c.l.b16 %v585
    %v622 = vunpack.c.l.b16 %v586
    %v623 = vunpack.c.l.b16 %v587
    %v624 = vunpack.c.l.b16 %v588
    %v625 = vunpack.c.l.b16 %v589
    %v626 = vunpack.c.l.b16 %v590
    %v627 = vunpack.c.l.b16 %v591
    %v628 = vpack.c.b16 %v613, %v612
    %v629 = vpack.c.b16 %v615, %v614
    %v630 = vpack.c.b16 %v617, %v616
    %v631 = vpack.c.b16 %v619, %v618
    %v632 = vpack.c.b16 %v621, %v620
    %v633 = vpack.c.b16 %v623, %v622
    %v634 = vpack.c.b16 %v625, %v624
    %v635 = vpack.c.b16 %v627, %v626
    %644 = vmatpush.bf16.msra.mxu0 %v635
    %645 = vmatpush.bf16.msra.mxu0 %v634
    %646 = vmatpush.bf16.msra.mxu0 %v633
    %647 = vmatpush.bf16.msra.mxu0 %v632
    %648 = vmatpush.bf16.msra.mxu0 %v631
    %649 = vmatpush.bf16.msra.mxu0 %v630
    %650 = vmatpush.bf16.msra.mxu0 %v629
    %651 = vmatpush.bf16.msra.mxu0 %v628
    %652 = vmatmul.bf16.gmra.mxu0 %v575
    %v653 = vpop.f32.mrf.mxu0
    %v654 = vadd.f32 %v594, %v653
    %v655 = vpop.f32.mrf.mxu0
    %v656 = vadd.f32 %v594, %v655
    %657 = vdwg.mxu0
    %658 = vst.msk [vmem:[#allocation7] sm:$0xff] %vm471, %v654
    %659 = vst.msk [vmem:[#allocation7 + $0x8] sm:$0xff] %vm471, %v656
    // Predicated region
    $region30: #{tpu_custom_call.1} parent=1 // pred_check
      _
    $region31: #{tpu_custom_call.1} parent=1 // pred_check_branch
      %661 = sbr.rel (0) target = $region33
    $region32: #{tpu_custom_call.1} parent=1 // pred_region
      %663 = vsyncadd [#allocation4], 0
      %s664 = sshll.u32 [#allocation7], 4
      %s665 = int_to_ptr.vmem [resolvable:$true] %s664
      %s666 = sshll.u32 %s5, 4
      %s667 = int_to_ptr.hbm [resolvable:$true] %s666
      %672 = dma.vmem_to_hbm [thread:$0]  %s665, 256, %s667, [#allocation4], 128, 128, 8
    $region33: #{tpu_custom_call.1} parent=1 // pred_fallthru
      _
    // Predicated region
    $region34: #{tpu_custom_call.1} parent=1 // pred_check
      _
    $region35: #{tpu_custom_call.1} parent=1 // pred_check_branch
      %674 = sbr.rel (0) target = $region37
    $region36: #{tpu_custom_call.1} parent=1 // pred_region
      %676 = dma.done [#allocation4], 256
    $region37: #{tpu_custom_call.1} parent=1 // pred_fallthru
      _
    %677 = vsyncpa [#allocation3], 1
    %678 = vsyncpa [#allocation6], 1
    %679 = vsyncpa [#allocation4], 1

</llo_original>
